<compile_context>
chip_gen: v6e
topology: v6e:2x2x1
jax: 0.10.0
libtpu: 0.0.40
codegen_flags: <defaults>
</compile_context>

<pallas_src>
import functools

import numpy as np
import jax
import jax.numpy as jnp
from jax import lax
from jax.experimental import pallas as pl
from jax.experimental.pallas import tpu as pltpu


_NEG = -1e9  # finite "minus infinity" used to suppress padded tag rows


def _round_up(x, m):
    return (x + m - 1) // m * m


# ----------------------------------------------------------------------------
# Pallas kernel: forward-algorithm log partition, batch on lanes
# ----------------------------------------------------------------------------
def _crf_logz_kernel(em_ref, mask_ref, start_ref, etrans_ref, end_ref,
                     logz_ref, alpha_ref, *, num_tags, unroll):
    # em_ref    : (S_TILE, T_pad, B_TILE)  emissions, time-major; padded tag
    #             rows carry _NEG so they never win the per-step max.
    # mask_ref  : (S_TILE, 1, B_TILE)      recursion mask (column 0 pre-zeroed)
    # start_ref : (T_pad, 1)
    # etrans_ref: (num_tags, T_pad, B_TILE)  exp(transitions[p, :]) lane-broadcast
    # end_ref   : (T_pad, 1)
    # logz_ref  : (1, B_TILE)              output (written at last time step)
    # alpha_ref : (T_pad, B_TILE)          forward-variable carry (VMEM scratch)
    s_idx = pl.program_id(1)
    s_tile = em_ref.shape[0]

    # alpha_0 = start + emissions[0]   (first time slab only)
    @pl.when(s_idx == 0)
    def _init():
        alpha_ref[...] = start_ref[...] + em_ref[0]

    # Loop-invariant transition rows (already exp()'ed and lane-broadcast in
    # the wrapper); only num_tags (<=8) small vregs, hoisted once per grid step.
    etr = [etrans_ref[p] for p in range(num_tags)]

    def step(j, alpha):
        em_j = em_ref[j]                               # (T_pad, B)
        m_j = mask_ref[j]                              # (1, B) float 1.0/0.0
        # exp-factored logsumexp over previous tag p:
        #   nxt[c] = em[c] + m_b + log( sum_p exp(alpha[p]-m_b) * exp(trans[p,c]) )
        m_b = jnp.max(alpha, axis=0, keepdims=True)    # (1, B) cross-sublane max
        ealpha = jnp.exp(alpha - m_b)                  # single EUP exp per step
        s = ealpha[0:1, :] * etr[0]
        for p in range(1, num_tags):
            s = s + ealpha[p:p + 1, :] * etr[p]
        nxt = em_j + m_b + jnp.log(s)                  # single EUP log per step
        return jnp.where(m_j > 0.5, nxt, alpha)

    alpha = lax.fori_loop(0, s_tile, step, alpha_ref[...], unroll=unroll)
    alpha_ref[...] = alpha

    # finalize: logZ = logsumexp_t(alpha[t] + end[t])  -> lane-dense (1, B)
    @pl.when(s_idx == pl.num_programs(1) - 1)
    def _finalize():
        v = alpha + end_ref[...]                       # padded rows ~ -1e9
        vm = jnp.max(v, axis=0, keepdims=True)
        ssum = jnp.sum(jnp.exp(v - vm), axis=0, keepdims=True)
        logz_ref[...] = vm + jnp.log(ssum)


# ----------------------------------------------------------------------------
# Wrapper: numerator via XLA gathers + Pallas log-partition + token_mean
# ----------------------------------------------------------------------------
def crf_token_mean_loss(emissions, tags, mask, start_t, end_t, trans,
                        s_tile=64, b_tile=128):
    """CRF.forward(emissions, tags, mask, reduction='token_mean').

    emissions: (B, S, T) f32 (batch_first), tags: (B, S) int32, mask: (B, S) bool.
    Assumes the torchcrf contract: mask[:, 0] all True, masks are contiguous
    prefixes (required by the gather numerator and seq_ends = sum(mask)-1).
    """
    B, S, T = emissions.shape
    emissions = emissions.astype(jnp.float32)
    start_t = jnp.asarray(start_t, jnp.float32)
    end_t = jnp.asarray(end_t, jnp.float32)
    trans = jnp.asarray(trans, jnp.float32)
    maskf = mask.astype(jnp.float32)

    # ----- gold-path numerator: gather-bound, plain XLA ----------------------
    b_idx = jnp.arange(B)
    first_tags = tags[:, 0]
    num = start_t[first_tags] + emissions[b_idx, 0, first_tags]
    em_tag = jnp.take_along_axis(emissions, tags[:, :, None], axis=2)[:, :, 0]
    trans_sc = trans[tags[:, :-1], tags[:, 1:]]                      # (B, S-1)
    num = num + jnp.sum((trans_sc + em_tag[:, 1:]) * maskf[:, 1:], axis=1)
    seq_ends = jnp.sum(mask.astype(jnp.int32), axis=1) - 1
    last_tags = tags[b_idx, seq_ends]
    num = num + end_t[last_tags]                                     # (B,)

    # ----- log-partition via the Pallas kernel -------------------------------
    T_pad = _round_up(T, 8)
    s_tile = max(8, min(s_tile, _round_up(S, 8)))
    S_pad = _round_up(S, s_tile)
    B_pad = _round_up(B, b_tile)
    unroll = min(8, s_tile)

    # tag-row pad offset: padded tag rows pushed to a large finite negative so
    # they never win the per-step max and underflow to 0 in the exp sums.
    tag_pad = jnp.where(jnp.arange(T_pad) < T, 0.0, _NEG).astype(jnp.float32)

    # time-major, tags on sublanes, batch on lanes.
    em_p = jnp.pad(jnp.transpose(emissions, (1, 2, 0)),
                   ((0, S_pad - S), (0, T_pad - T), (0, B_pad - B)))
    em_p = em_p + tag_pad[None, :, None]

    # recursion mask: time step 0 is the init (pl.when), never a recursion step.
    rec_mask = maskf.at[:, 0].set(0.0)
    mask_p = jnp.pad(jnp.transpose(rec_mask, (1, 0))[:, None, :],
                     ((0, S_pad - S), (0, 0), (0, B_pad - B)))

    start_col = (jnp.pad(start_t, (0, T_pad - T)) + tag_pad)[:, None]  # (T_pad, 1)
    end_col = jnp.pad(end_t, (0, T_pad - T))[:, None]                  # (T_pad, 1)
    # pre-exponentiated, pre-lane-broadcast transition rows: (T, T_pad, b_tile)
    exp_trans = jnp.exp(jnp.pad(trans, ((0, 0), (0, T_pad - T))))
    exp_trans_b = jnp.broadcast_to(exp_trans[:, :, None], (T, T_pad, b_tile))

    grid = (B_pad // b_tile, S_pad // s_tile)
    logz_pad = pl.pallas_call(
        functools.partial(_crf_logz_kernel, num_tags=T, unroll=unroll),
        out_shape=jax.ShapeDtypeStruct((1, B_pad), jnp.float32),
        grid_spec=pltpu.PrefetchScalarGridSpec(
            num_scalar_prefetch=0,
            grid=grid,
            in_specs=[
                pl.BlockSpec((s_tile, T_pad, b_tile), lambda b, s: (s, 0, b)),
                pl.BlockSpec((s_tile, 1, b_tile), lambda b, s: (s, 0, b)),
                pl.BlockSpec((T_pad, 1), lambda b, s: (0, 0)),
                pl.BlockSpec((T, T_pad, b_tile), lambda b, s: (0, 0, 0)),
                pl.BlockSpec((T_pad, 1), lambda b, s: (0, 0)),
            ],
            out_specs=pl.BlockSpec((1, b_tile), lambda b, s: (0, b)),
            scratch_shapes=[pltpu.VMEM((T_pad, b_tile), jnp.float32)],
        ),
        compiler_params=pltpu.CompilerParams(
            dimension_semantics=("parallel", "arbitrary"),
            vmem_limit_bytes=16 * 1024 * 1024,
        ),
    )(em_p, mask_p, start_col, exp_trans_b, end_col)

    logz = logz_pad[0, :B]                                           # (B,)
    llh = num - logz
    # reduction == 'token_mean'
    return jnp.sum(llh) / jnp.sum(maskf)


# ----------------------------------------------------------------------------
# Parameter construction: torchcrf reset_parameters + BIO penalty init
# ----------------------------------------------------------------------------
def build_crf_params(tag_names, key, imp_value=-10000.0):
    T = len(tag_names)
    k1, k2, k3 = jax.random.split(key, 3)
    start = np.array(jax.random.uniform(k1, (T,), minval=-0.1, maxval=0.1))
    end = np.array(jax.random.uniform(k2, (T,), minval=-0.1, maxval=0.1))
    trans = np.array(jax.random.uniform(k3, (T, T), minval=-0.1, maxval=0.1))

    prefixes = set(t.split('-')[0] for t in tag_names)
    assert prefixes == set(['B', 'I', 'O']), "this script implements the BIO branch"
    invalid_begin = ('B', 'I')
    invalid_end = ('B', 'I')
    invalid_transitions_position = {'O': 'I'}
    invalid_transitions_tags = {'B': 'I', 'I': 'I'}

    for i, t in enumerate(tag_names):
        p = t.split('-')[0]
        if p in invalid_begin:
            start[i] = imp_value
        if p in invalid_end:
            end[i] = imp_value

    tag_is = {p: [i for i, t in enumerate(tag_names) if t.split('-')[0] == p]
              for p in prefixes}
    for from_p, to_list in invalid_transitions_position.items():
        for fi in tag_is[from_p]:
            for to_p in list(to_list):
                for ti in tag_is[to_p]:
                    trans[fi, ti] = imp_value
    for from_p, to_list in invalid_transitions_tags.items():
        for fi in tag_is[from_p]:
            for to_p in list(to_list):
                for ti in tag_is[to_p]:
                    if tag_names[fi].split('-')[1] != tag_names[ti].split('-')[1]:
                        trans[fi, ti] = imp_value

    return jnp.asarray(start), jnp.asarray(end), jnp.asarray(trans)


# ----------------------------------------------------------------------------
# Pure-JAX reference (mirrors torchcrf) for a correctness check
# ----------------------------------------------------------------------------
def crf_reference(emissions, tags, mask, start_t, end_t, trans):
    em = jnp.transpose(emissions, (1, 0, 2))        # (S, B, T)
    tg = jnp.transpose(tags, (1, 0))                # (S, B)
    mk = jnp.transpose(mask, (1, 0)).astype(jnp.float32)
    S, B, T = em.shape
    barange = jnp.arange(B)

    num = start_t[tg[0]] + em[0, barange, tg[0]]
    for i in range(1, S):
        num = num + trans[tg[i - 1], tg[i]] * mk[i]
        num = num + em[i, barange, tg[i]] * mk[i]
    seq_ends = jnp.sum(mk, axis=0).astype(jnp.int32) - 1
    last_tags = tg[seq_ends, barange]
    num = num + end_t[last_tags]

    score = start_t[None, :] + em[0]
    for i in range(1, S):
        brd = score[:, :, None] + trans[None, :, :] + em[i][:, None, :]
        nxt = jax.nn.logsumexp(brd, axis=1)
        score = jnp.where(mk[i][:, None] > 0.5, nxt, score)
    score = score + end_t[None, :]
    logz = jax.nn.logsumexp(score, axis=1)

    llh = num - logz
    return jnp.sum(llh) / jnp.sum(mk)


# TODO(synk): CRF.decode (Viterbi) is not part of forward() and is not implemented here.

if __name__ == "__main__":
    tag_names = ['O', 'B-PER', 'I-PER', 'B-LOC', 'I-LOC']
    T = len(tag_names)
    B, S = 2, 8

    key = jax.random.PRNGKey(0)
    kp, ke, kt, km = jax.random.split(key, 4)

    start_t, end_t, trans = build_crf_params(tag_names, kp)

    emissions = jax.random.normal(ke, (B, S, T), dtype=jnp.float32)
    tags = jax.random.randint(kt, (B, S), 0, T, dtype=jnp.int32)
    lengths = jnp.array([S, 5], dtype=jnp.int32)           # mask[:, 0] all True
    mask = (jnp.arange(S)[None, :] < lengths[:, None])

    loss = jax.jit(crf_token_mean_loss)(emissions, tags, mask, start_t, end_t, trans)
    loss = jax.block_until_ready(loss)

    ref = crf_reference(emissions, tags, mask, start_t, end_t, trans)
    np.testing.assert_allclose(np.asarray(loss), np.asarray(ref),
                               rtol=1e-3, atol=1.0)

    print("KERNEL_OK")
</pallas_src>

<mosaic_0001>
module attributes {stable_mosaic.version = 11 : i64} {
  func.func @_crf_logz_kernel(%arg0: i32, %arg1: i32, %arg2: memref<8x8x128xf32, #tpu.memory_space<vmem>>, %arg3: memref<8x1x128xf32, #tpu.memory_space<vmem>>, %arg4: memref<8x1xf32, #tpu.memory_space<vmem>>, %arg5: memref<5x8x128xf32, #tpu.memory_space<vmem>>, %arg6: memref<8x1xf32, #tpu.memory_space<vmem>>, %arg7: memref<1x128xf32, #tpu.memory_space<vmem>>, %arg8: memref<8x128xf32, #tpu.memory_space<vmem>>) attributes {dimension_semantics = [#tpu.dimension_semantics<parallel>, #tpu.dimension_semantics<arbitrary>], iteration_bounds = array<i64: 1, 1>, scalar_prefetch = 0 : i64, scratch_operands = 1 : i64, tpu.core_type = #tpu.core_type<tc>, window_params = [{transform_indices = @transform_0, window_bounds = array<i64: 8, 8, 128>}, {transform_indices = @transform_1, window_bounds = array<i64: 8, 1, 128>}, {pipeline_mode = #tpu.pipeline_mode<synchronous>, transform_indices = @transform_2, window_bounds = array<i64: 8, 1>}, {pipeline_mode = #tpu.pipeline_mode<synchronous>, transform_indices = @transform_3, window_bounds = array<i64: 5, 8, 128>}, {pipeline_mode = #tpu.pipeline_mode<synchronous>, transform_indices = @transform_4, window_bounds = array<i64: 8, 1>}, {transform_indices = @transform_5, window_bounds = array<i64: 1, 128>}]} {
    %c0_i32 = arith.constant 0 : i32
    %0 = arith.cmpi eq, %arg1, %c0_i32 : i32
    %1 = arith.extui %0 : i1 to i32
    %c0_i32_0 = arith.constant 0 : i32
    %2 = arith.cmpi ne, %1, %c0_i32_0 : i32
    scf.if %2 {
      %c0_65 = arith.constant 0 : index
      %c0_66 = arith.constant 0 : index
      %330 = vector.load %arg4[%c0_65, %c0_66] : memref<8x1xf32, #tpu.memory_space<vmem>>, vector<8x1xf32>
      %c0_67 = arith.constant 0 : index
      %c0_68 = arith.constant 0 : index
      %c0_69 = arith.constant 0 : index
      %331 = vector.load %arg2[%c0_67, %c0_68, %c0_69] : memref<8x8x128xf32, #tpu.memory_space<vmem>>, vector<1x8x128xf32>
      %332 = vector.shape_cast %331 : vector<1x8x128xf32> to vector<8x128xf32>
      %333 = vector.broadcast %330 : vector<8x1xf32> to vector<8x128xf32>
      %334 = arith.addf %333, %332 : vector<8x128xf32>
      %c0_70 = arith.constant 0 : index
      %c0_71 = arith.constant 0 : index
      %335 = vector.load %arg8[%c0_70, %c0_71] : memref<8x128xf32, #tpu.memory_space<vmem>>, vector<8x128xf32>
      tpu.vector_store %arg8[%c0_70, %c0_71], %334 {strides = array<i32>} : memref<8x128xf32, #tpu.memory_space<vmem>>, vector<8x128xf32>,
    } else {
    }
    %c0 = arith.constant 0 : index
    %c0_1 = arith.constant 0 : index
    %c0_2 = arith.constant 0 : index
    %3 = vector.load %arg5[%c0, %c0_1, %c0_2] : memref<5x8x128xf32, #tpu.memory_space<vmem>>, vector<1x8x128xf32>
    %4 = vector.shape_cast %3 : vector<1x8x128xf32> to vector<8x128xf32>
    %c1 = arith.constant 1 : index
    %c0_3 = arith.constant 0 : index
    %c0_4 = arith.constant 0 : index
    %5 = vector.load %arg5[%c1, %c0_3, %c0_4] : memref<5x8x128xf32, #tpu.memory_space<vmem>>, vector<1x8x128xf32>
    %6 = vector.shape_cast %5 : vector<1x8x128xf32> to vector<8x128xf32>
    %c2 = arith.constant 2 : index
    %c0_5 = arith.constant 0 : index
    %c0_6 = arith.constant 0 : index
    %7 = vector.load %arg5[%c2, %c0_5, %c0_6] : memref<5x8x128xf32, #tpu.memory_space<vmem>>, vector<1x8x128xf32>
    %8 = vector.shape_cast %7 : vector<1x8x128xf32> to vector<8x128xf32>
    %c3 = arith.constant 3 : index
    %c0_7 = arith.constant 0 : index
    %c0_8 = arith.constant 0 : index
    %9 = vector.load %arg5[%c3, %c0_7, %c0_8] : memref<5x8x128xf32, #tpu.memory_space<vmem>>, vector<1x8x128xf32>
    %10 = vector.shape_cast %9 : vector<1x8x128xf32> to vector<8x128xf32>
    %c4 = arith.constant 4 : index
    %c0_9 = arith.constant 0 : index
    %c0_10 = arith.constant 0 : index
    %11 = vector.load %arg5[%c4, %c0_9, %c0_10] : memref<5x8x128xf32, #tpu.memory_space<vmem>>, vector<1x8x128xf32>
    %12 = vector.shape_cast %11 : vector<1x8x128xf32> to vector<8x128xf32>
    %c0_11 = arith.constant 0 : index
    %c0_12 = arith.constant 0 : index
    %13 = vector.load %arg8[%c0_11, %c0_12] : memref<8x128xf32, #tpu.memory_space<vmem>>, vector<8x128xf32>
    %c0_i32_13 = arith.constant 0 : i32
    %14 = arith.index_cast %c0_i32_13 : i32 to index
    %c0_14 = arith.constant 0 : index
    %c0_15 = arith.constant 0 : index
    %15 = vector.load %arg2[%14, %c0_14, %c0_15] : memref<8x8x128xf32, #tpu.memory_space<vmem>>, vector<1x8x128xf32>
    %16 = vector.shape_cast %15 : vector<1x8x128xf32> to vector<8x128xf32>
    %17 = arith.index_cast %c0_i32_13 : i32 to index
    %c0_16 = arith.constant 0 : index
    %c0_17 = arith.constant 0 : index
    %18 = vector.load %arg3[%17, %c0_16, %c0_17] : memref<8x1x128xf32, #tpu.memory_space<vmem>>, vector<1x1x128xf32>
    %19 = vector.shape_cast %18 : vector<1x1x128xf32> to vector<1x128xf32>
    %cst = arith.constant dense<0xFF800000> : vector<128xf32>
    %20 = vector.multi_reduction <maximumf>, %13, %cst [0] : vector<8x128xf32> to vector<128xf32>
    %21 = vector.shape_cast %20 : vector<128xf32> to vector<1x128xf32>
    %22 = vector.broadcast %21 : vector<1x128xf32> to vector<8x128xf32>
    %23 = arith.subf %13, %22 : vector<8x128xf32>
    %24 = math.exp %23 : vector<8x128xf32>
    %25 = vector.extract_strided_slice %24 {offsets = [0, 0], sizes = [1, 128], strides = [1, 1]} : vector<8x128xf32> to vector<1x128xf32>
    %26 = vector.broadcast %25 : vector<1x128xf32> to vector<8x128xf32>
    %27 = arith.mulf %26, %4 : vector<8x128xf32>
    %28 = vector.extract_strided_slice %24 {offsets = [1, 0], sizes = [1, 128], strides = [1, 1]} : vector<8x128xf32> to vector<1x128xf32>
    %29 = vector.broadcast %28 : vector<1x128xf32> to vector<8x128xf32>
    %30 = arith.mulf %29, %6 : vector<8x128xf32>
    %31 = arith.addf %27, %30 : vector<8x128xf32>
    %32 = vector.extract_strided_slice %24 {offsets = [2, 0], sizes = [1, 128], strides = [1, 1]} : vector<8x128xf32> to vector<1x128xf32>
    %33 = vector.broadcast %32 : vector<1x128xf32> to vector<8x128xf32>
    %34 = arith.mulf %33, %8 : vector<8x128xf32>
    %35 = arith.addf %31, %34 : vector<8x128xf32>
    %36 = vector.extract_strided_slice %24 {offsets = [3, 0], sizes = [1, 128], strides = [1, 1]} : vector<8x128xf32> to vector<1x128xf32>
    %37 = vector.broadcast %36 : vector<1x128xf32> to vector<8x128xf32>
    %38 = arith.mulf %37, %10 : vector<8x128xf32>
    %39 = arith.addf %35, %38 : vector<8x128xf32>
    %40 = vector.extract_strided_slice %24 {offsets = [4, 0], sizes = [1, 128], strides = [1, 1]} : vector<8x128xf32> to vector<1x128xf32>
    %41 = vector.broadcast %40 : vector<1x128xf32> to vector<8x128xf32>
    %42 = arith.mulf %41, %12 : vector<8x128xf32>
    %43 = arith.addf %39, %42 : vector<8x128xf32>
    %44 = vector.broadcast %21 : vector<1x128xf32> to vector<8x128xf32>
    %45 = arith.addf %16, %44 : vector<8x128xf32>
    %46 = math.log %43 : vector<8x128xf32>
    %47 = arith.addf %45, %46 : vector<8x128xf32>
    %cst_18 = arith.constant 5.000000e-01 : f32
    %48 = vector.broadcast %cst_18 : f32 to vector<1x128xf32>
    %49 = arith.cmpf ogt, %19, %48 : vector<1x128xf32>
    %50 = vector.shape_cast %49 : vector<1x128xi1> to vector<1x128xi1>
    %51 = vector.broadcast %50 : vector<1x128xi1> to vector<8x128xi1>
    %52 = arith.select %51, %47, %13 : vector<8x128xi1>, vector<8x128xf32>
    %c1_i32 = arith.constant 1 : i32
    %53 = arith.index_cast %c1_i32 : i32 to index
    %c0_19 = arith.constant 0 : index
    %c0_20 = arith.constant 0 : index
    %54 = vector.load %arg2[%53, %c0_19, %c0_20] : memref<8x8x128xf32, #tpu.memory_space<vmem>>, vector<1x8x128xf32>
    %55 = vector.shape_cast %54 : vector<1x8x128xf32> to vector<8x128xf32>
    %56 = arith.index_cast %c1_i32 : i32 to index
    %c0_21 = arith.constant 0 : index
    %c0_22 = arith.constant 0 : index
    %57 = vector.load %arg3[%56, %c0_21, %c0_22] : memref<8x1x128xf32, #tpu.memory_space<vmem>>, vector<1x1x128xf32>
    %58 = vector.shape_cast %57 : vector<1x1x128xf32> to vector<1x128xf32>
    %cst_23 = arith.constant dense<0xFF800000> : vector<128xf32>
    %59 = vector.multi_reduction <maximumf>, %52, %cst_23 [0] : vector<8x128xf32> to vector<128xf32>
    %60 = vector.shape_cast %59 : vector<128xf32> to vector<1x128xf32>
    %61 = vector.broadcast %60 : vector<1x128xf32> to vector<8x128xf32>
    %62 = arith.subf %52, %61 : vector<8x128xf32>
    %63 = math.exp %62 : vector<8x128xf32>
    %64 = vector.extract_strided_slice %63 {offsets = [0, 0], sizes = [1, 128], strides = [1, 1]} : vector<8x128xf32> to vector<1x128xf32>
    %65 = vector.broadcast %64 : vector<1x128xf32> to vector<8x128xf32>
    %66 = arith.mulf %65, %4 : vector<8x128xf32>
    %67 = vector.extract_strided_slice %63 {offsets = [1, 0], sizes = [1, 128], strides = [1, 1]} : vector<8x128xf32> to vector<1x128xf32>
    %68 = vector.broadcast %67 : vector<1x128xf32> to vector<8x128xf32>
    %69 = arith.mulf %68, %6 : vector<8x128xf32>
    %70 = arith.addf %66, %69 : vector<8x128xf32>
    %71 = vector.extract_strided_slice %63 {offsets = [2, 0], sizes = [1, 128], strides = [1, 1]} : vector<8x128xf32> to vector<1x128xf32>
    %72 = vector.broadcast %71 : vector<1x128xf32> to vector<8x128xf32>
    %73 = arith.mulf %72, %8 : vector<8x128xf32>
    %74 = arith.addf %70, %73 : vector<8x128xf32>
    %75 = vector.extract_strided_slice %63 {offsets = [3, 0], sizes = [1, 128], strides = [1, 1]} : vector<8x128xf32> to vector<1x128xf32>
    %76 = vector.broadcast %75 : vector<1x128xf32> to vector<8x128xf32>
    %77 = arith.mulf %76, %10 : vector<8x128xf32>
    %78 = arith.addf %74, %77 : vector<8x128xf32>
    %79 = vector.extract_strided_slice %63 {offsets = [4, 0], sizes = [1, 128], strides = [1, 1]} : vector<8x128xf32> to vector<1x128xf32>
    %80 = vector.broadcast %79 : vector<1x128xf32> to vector<8x128xf32>
    %81 = arith.mulf %80, %12 : vector<8x128xf32>
    %82 = arith.addf %78, %81 : vector<8x128xf32>
    %83 = vector.broadcast %60 : vector<1x128xf32> to vector<8x128xf32>
    %84 = arith.addf %55, %83 : vector<8x128xf32>
    %85 = math.log %82 : vector<8x128xf32>
    %86 = arith.addf %84, %85 : vector<8x128xf32>
    %cst_24 = arith.constant 5.000000e-01 : f32
    %87 = vector.broadcast %cst_24 : f32 to vector<1x128xf32>
    %88 = arith.cmpf ogt, %58, %87 : vector<1x128xf32>
    %89 = vector.shape_cast %88 : vector<1x128xi1> to vector<1x128xi1>
    %90 = vector.broadcast %89 : vector<1x128xi1> to vector<8x128xi1>
    %91 = arith.select %90, %86, %52 : vector<8x128xi1>, vector<8x128xf32>
    %c2_i32 = arith.constant 2 : i32
    %92 = arith.index_cast %c2_i32 : i32 to index
    %c0_25 = arith.constant 0 : index
    %c0_26 = arith.constant 0 : index
    %93 = vector.load %arg2[%92, %c0_25, %c0_26] : memref<8x8x128xf32, #tpu.memory_space<vmem>>, vector<1x8x128xf32>
    %94 = vector.shape_cast %93 : vector<1x8x128xf32> to vector<8x128xf32>
    %95 = arith.index_cast %c2_i32 : i32 to index
    %c0_27 = arith.constant 0 : index
    %c0_28 = arith.constant 0 : index
    %96 = vector.load %arg3[%95, %c0_27, %c0_28] : memref<8x1x128xf32, #tpu.memory_space<vmem>>, vector<1x1x128xf32>
    %97 = vector.shape_cast %96 : vector<1x1x128xf32> to vector<1x128xf32>
    %cst_29 = arith.constant dense<0xFF800000> : vector<128xf32>
    %98 = vector.multi_reduction <maximumf>, %91, %cst_29 [0] : vector<8x128xf32> to vector<128xf32>
    %99 = vector.shape_cast %98 : vector<128xf32> to vector<1x128xf32>
    %100 = vector.broadcast %99 : vector<1x128xf32> to vector<8x128xf32>
    %101 = arith.subf %91, %100 : vector<8x128xf32>
    %102 = math.exp %101 : vector<8x128xf32>
    %103 = vector.extract_strided_slice %102 {offsets = [0, 0], sizes = [1, 128], strides = [1, 1]} : vector<8x128xf32> to vector<1x128xf32>
    %104 = vector.broadcast %103 : vector<1x128xf32> to vector<8x128xf32>
    %105 = arith.mulf %104, %4 : vector<8x128xf32>
    %106 = vector.extract_strided_slice %102 {offsets = [1, 0], sizes = [1, 128], strides = [1, 1]} : vector<8x128xf32> to vector<1x128xf32>
    %107 = vector.broadcast %106 : vector<1x128xf32> to vector<8x128xf32>
    %108 = arith.mulf %107, %6 : vector<8x128xf32>
    %109 = arith.addf %105, %108 : vector<8x128xf32>
    %110 = vector.extract_strided_slice %102 {offsets = [2, 0], sizes = [1, 128], strides = [1, 1]} : vector<8x128xf32> to vector<1x128xf32>
    %111 = vector.broadcast %110 : vector<1x128xf32> to vector<8x128xf32>
    %112 = arith.mulf %111, %8 : vector<8x128xf32>
    %113 = arith.addf %109, %112 : vector<8x128xf32>
    %114 = vector.extract_strided_slice %102 {offsets = [3, 0], sizes = [1, 128], strides = [1, 1]} : vector<8x128xf32> to vector<1x128xf32>
    %115 = vector.broadcast %114 : vector<1x128xf32> to vector<8x128xf32>
    %116 = arith.mulf %115, %10 : vector<8x128xf32>
    %117 = arith.addf %113, %116 : vector<8x128xf32>
    %118 = vector.extract_strided_slice %102 {offsets = [4, 0], sizes = [1, 128], strides = [1, 1]} : vector<8x128xf32> to vector<1x128xf32>
    %119 = vector.broadcast %118 : vector<1x128xf32> to vector<8x128xf32>
    %120 = arith.mulf %119, %12 : vector<8x128xf32>
    %121 = arith.addf %117, %120 : vector<8x128xf32>
    %122 = vector.broadcast %99 : vector<1x128xf32> to vector<8x128xf32>
    %123 = arith.addf %94, %122 : vector<8x128xf32>
    %124 = math.log %121 : vector<8x128xf32>
    %125 = arith.addf %123, %124 : vector<8x128xf32>
    %cst_30 = arith.constant 5.000000e-01 : f32
    %126 = vector.broadcast %cst_30 : f32 to vector<1x128xf32>
    %127 = arith.cmpf ogt, %97, %126 : vector<1x128xf32>
    %128 = vector.shape_cast %127 : vector<1x128xi1> to vector<1x128xi1>
    %129 = vector.broadcast %128 : vector<1x128xi1> to vector<8x128xi1>
    %130 = arith.select %129, %125, %91 : vector<8x128xi1>, vector<8x128xf32>
    %c3_i32 = arith.constant 3 : i32
    %131 = arith.index_cast %c3_i32 : i32 to index
    %c0_31 = arith.constant 0 : index
    %c0_32 = arith.constant 0 : index
    %132 = vector.load %arg2[%131, %c0_31, %c0_32] : memref<8x8x128xf32, #tpu.memory_space<vmem>>, vector<1x8x128xf32>
    %133 = vector.shape_cast %132 : vector<1x8x128xf32> to vector<8x128xf32>
    %134 = arith.index_cast %c3_i32 : i32 to index
    %c0_33 = arith.constant 0 : index
    %c0_34 = arith.constant 0 : index
    %135 = vector.load %arg3[%134, %c0_33, %c0_34] : memref<8x1x128xf32, #tpu.memory_space<vmem>>, vector<1x1x128xf32>
    %136 = vector.shape_cast %135 : vector<1x1x128xf32> to vector<1x128xf32>
    %cst_35 = arith.constant dense<0xFF800000> : vector<128xf32>
    %137 = vector.multi_reduction <maximumf>, %130, %cst_35 [0] : vector<8x128xf32> to vector<128xf32>
    %138 = vector.shape_cast %137 : vector<128xf32> to vector<1x128xf32>
    %139 = vector.broadcast %138 : vector<1x128xf32> to vector<8x128xf32>
    %140 = arith.subf %130, %139 : vector<8x128xf32>
    %141 = math.exp %140 : vector<8x128xf32>
    %142 = vector.extract_strided_slice %141 {offsets = [0, 0], sizes = [1, 128], strides = [1, 1]} : vector<8x128xf32> to vector<1x128xf32>
    %143 = vector.broadcast %142 : vector<1x128xf32> to vector<8x128xf32>
    %144 = arith.mulf %143, %4 : vector<8x128xf32>
    %145 = vector.extract_strided_slice %141 {offsets = [1, 0], sizes = [1, 128], strides = [1, 1]} : vector<8x128xf32> to vector<1x128xf32>
    %146 = vector.broadcast %145 : vector<1x128xf32> to vector<8x128xf32>
    %147 = arith.mulf %146, %6 : vector<8x128xf32>
    %148 = arith.addf %144, %147 : vector<8x128xf32>
    %149 = vector.extract_strided_slice %141 {offsets = [2, 0], sizes = [1, 128], strides = [1, 1]} : vector<8x128xf32> to vector<1x128xf32>
    %150 = vector.broadcast %149 : vector<1x128xf32> to vector<8x128xf32>
    %151 = arith.mulf %150, %8 : vector<8x128xf32>
    %152 = arith.addf %148, %151 : vector<8x128xf32>
    %153 = vector.extract_strided_slice %141 {offsets = [3, 0], sizes = [1, 128], strides = [1, 1]} : vector<8x128xf32> to vector<1x128xf32>
    %154 = vector.broadcast %153 : vector<1x128xf32> to vector<8x128xf32>
    %155 = arith.mulf %154, %10 : vector<8x128xf32>
    %156 = arith.addf %152, %155 : vector<8x128xf32>
    %157 = vector.extract_strided_slice %141 {offsets = [4, 0], sizes = [1, 128], strides = [1, 1]} : vector<8x128xf32> to vector<1x128xf32>
    %158 = vector.broadcast %157 : vector<1x128xf32> to vector<8x128xf32>
    %159 = arith.mulf %158, %12 : vector<8x128xf32>
    %160 = arith.addf %156, %159 : vector<8x128xf32>
    %161 = vector.broadcast %138 : vector<1x128xf32> to vector<8x128xf32>
    %162 = arith.addf %133, %161 : vector<8x128xf32>
    %163 = math.log %160 : vector<8x128xf32>
    %164 = arith.addf %162, %163 : vector<8x128xf32>
    %cst_36 = arith.constant 5.000000e-01 : f32
    %165 = vector.broadcast %cst_36 : f32 to vector<1x128xf32>
    %166 = arith.cmpf ogt, %136, %165 : vector<1x128xf32>
    %167 = vector.shape_cast %166 : vector<1x128xi1> to vector<1x128xi1>
    %168 = vector.broadcast %167 : vector<1x128xi1> to vector<8x128xi1>
    %169 = arith.select %168, %164, %130 : vector<8x128xi1>, vector<8x128xf32>
    %c4_i32 = arith.constant 4 : i32
    %170 = arith.index_cast %c4_i32 : i32 to index
    %c0_37 = arith.constant 0 : index
    %c0_38 = arith.constant 0 : index
    %171 = vector.load %arg2[%170, %c0_37, %c0_38] : memref<8x8x128xf32, #tpu.memory_space<vmem>>, vector<1x8x128xf32>
    %172 = vector.shape_cast %171 : vector<1x8x128xf32> to vector<8x128xf32>
    %173 = arith.index_cast %c4_i32 : i32 to index
    %c0_39 = arith.constant 0 : index
    %c0_40 = arith.constant 0 : index
    %174 = vector.load %arg3[%173, %c0_39, %c0_40] : memref<8x1x128xf32, #tpu.memory_space<vmem>>, vector<1x1x128xf32>
    %175 = vector.shape_cast %174 : vector<1x1x128xf32> to vector<1x128xf32>
    %cst_41 = arith.constant dense<0xFF800000> : vector<128xf32>
    %176 = vector.multi_reduction <maximumf>, %169, %cst_41 [0] : vector<8x128xf32> to vector<128xf32>
    %177 = vector.shape_cast %176 : vector<128xf32> to vector<1x128xf32>
    %178 = vector.broadcast %177 : vector<1x128xf32> to vector<8x128xf32>
    %179 = arith.subf %169, %178 : vector<8x128xf32>
    %180 = math.exp %179 : vector<8x128xf32>
    %181 = vector.extract_strided_slice %180 {offsets = [0, 0], sizes = [1, 128], strides = [1, 1]} : vector<8x128xf32> to vector<1x128xf32>
    %182 = vector.broadcast %181 : vector<1x128xf32> to vector<8x128xf32>
    %183 = arith.mulf %182, %4 : vector<8x128xf32>
    %184 = vector.extract_strided_slice %180 {offsets = [1, 0], sizes = [1, 128], strides = [1, 1]} : vector<8x128xf32> to vector<1x128xf32>
    %185 = vector.broadcast %184 : vector<1x128xf32> to vector<8x128xf32>
    %186 = arith.mulf %185, %6 : vector<8x128xf32>
    %187 = arith.addf %183, %186 : vector<8x128xf32>
    %188 = vector.extract_strided_slice %180 {offsets = [2, 0], sizes = [1, 128], strides = [1, 1]} : vector<8x128xf32> to vector<1x128xf32>
    %189 = vector.broadcast %188 : vector<1x128xf32> to vector<8x128xf32>
    %190 = arith.mulf %189, %8 : vector<8x128xf32>
    %191 = arith.addf %187, %190 : vector<8x128xf32>
    %192 = vector.extract_strided_slice %180 {offsets = [3, 0], sizes = [1, 128], strides = [1, 1]} : vector<8x128xf32> to vector<1x128xf32>
    %193 = vector.broadcast %192 : vector<1x128xf32> to vector<8x128xf32>
    %194 = arith.mulf %193, %10 : vector<8x128xf32>
    %195 = arith.addf %191, %194 : vector<8x128xf32>
    %196 = vector.extract_strided_slice %180 {offsets = [4, 0], sizes = [1, 128], strides = [1, 1]} : vector<8x128xf32> to vector<1x128xf32>
    %197 = vector.broadcast %196 : vector<1x128xf32> to vector<8x128xf32>
    %198 = arith.mulf %197, %12 : vector<8x128xf32>
    %199 = arith.addf %195, %198 : vector<8x128xf32>
    %200 = vector.broadcast %177 : vector<1x128xf32> to vector<8x128xf32>
    %201 = arith.addf %172, %200 : vector<8x128xf32>
    %202 = math.log %199 : vector<8x128xf32>
    %203 = arith.addf %201, %202 : vector<8x128xf32>
    %cst_42 = arith.constant 5.000000e-01 : f32
    %204 = vector.broadcast %cst_42 : f32 to vector<1x128xf32>
    %205 = arith.cmpf ogt, %175, %204 : vector<1x128xf32>
    %206 = vector.shape_cast %205 : vector<1x128xi1> to vector<1x128xi1>
    %207 = vector.broadcast %206 : vector<1x128xi1> to vector<8x128xi1>
    %208 = arith.select %207, %203, %169 : vector<8x128xi1>, vector<8x128xf32>
    %c5_i32 = arith.constant 5 : i32
    %209 = arith.index_cast %c5_i32 : i32 to index
    %c0_43 = arith.constant 0 : index
    %c0_44 = arith.constant 0 : index
    %210 = vector.load %arg2[%209, %c0_43, %c0_44] : memref<8x8x128xf32, #tpu.memory_space<vmem>>, vector<1x8x128xf32>
    %211 = vector.shape_cast %210 : vector<1x8x128xf32> to vector<8x128xf32>
    %212 = arith.index_cast %c5_i32 : i32 to index
    %c0_45 = arith.constant 0 : index
    %c0_46 = arith.constant 0 : index
    %213 = vector.load %arg3[%212, %c0_45, %c0_46] : memref<8x1x128xf32, #tpu.memory_space<vmem>>, vector<1x1x128xf32>
    %214 = vector.shape_cast %213 : vector<1x1x128xf32> to vector<1x128xf32>
    %cst_47 = arith.constant dense<0xFF800000> : vector<128xf32>
    %215 = vector.multi_reduction <maximumf>, %208, %cst_47 [0] : vector<8x128xf32> to vector<128xf32>
    %216 = vector.shape_cast %215 : vector<128xf32> to vector<1x128xf32>
    %217 = vector.broadcast %216 : vector<1x128xf32> to vector<8x128xf32>
    %218 = arith.subf %208, %217 : vector<8x128xf32>
    %219 = math.exp %218 : vector<8x128xf32>
    %220 = vector.extract_strided_slice %219 {offsets = [0, 0], sizes = [1, 128], strides = [1, 1]} : vector<8x128xf32> to vector<1x128xf32>
    %221 = vector.broadcast %220 : vector<1x128xf32> to vector<8x128xf32>
    %222 = arith.mulf %221, %4 : vector<8x128xf32>
    %223 = vector.extract_strided_slice %219 {offsets = [1, 0], sizes = [1, 128], strides = [1, 1]} : vector<8x128xf32> to vector<1x128xf32>
    %224 = vector.broadcast %223 : vector<1x128xf32> to vector<8x128xf32>
    %225 = arith.mulf %224, %6 : vector<8x128xf32>
    %226 = arith.addf %222, %225 : vector<8x128xf32>
    %227 = vector.extract_strided_slice %219 {offsets = [2, 0], sizes = [1, 128], strides = [1, 1]} : vector<8x128xf32> to vector<1x128xf32>
    %228 = vector.broadcast %227 : vector<1x128xf32> to vector<8x128xf32>
    %229 = arith.mulf %228, %8 : vector<8x128xf32>
    %230 = arith.addf %226, %229 : vector<8x128xf32>
    %231 = vector.extract_strided_slice %219 {offsets = [3, 0], sizes = [1, 128], strides = [1, 1]} : vector<8x128xf32> to vector<1x128xf32>
    %232 = vector.broadcast %231 : vector<1x128xf32> to vector<8x128xf32>
    %233 = arith.mulf %232, %10 : vector<8x128xf32>
    %234 = arith.addf %230, %233 : vector<8x128xf32>
    %235 = vector.extract_strided_slice %219 {offsets = [4, 0], sizes = [1, 128], strides = [1, 1]} : vector<8x128xf32> to vector<1x128xf32>
    %236 = vector.broadcast %235 : vector<1x128xf32> to vector<8x128xf32>
    %237 = arith.mulf %236, %12 : vector<8x128xf32>
    %238 = arith.addf %234, %237 : vector<8x128xf32>
    %239 = vector.broadcast %216 : vector<1x128xf32> to vector<8x128xf32>
    %240 = arith.addf %211, %239 : vector<8x128xf32>
    %241 = math.log %238 : vector<8x128xf32>
    %242 = arith.addf %240, %241 : vector<8x128xf32>
    %cst_48 = arith.constant 5.000000e-01 : f32
    %243 = vector.broadcast %cst_48 : f32 to vector<1x128xf32>
    %244 = arith.cmpf ogt, %214, %243 : vector<1x128xf32>
    %245 = vector.shape_cast %244 : vector<1x128xi1> to vector<1x128xi1>
    %246 = vector.broadcast %245 : vector<1x128xi1> to vector<8x128xi1>
    %247 = arith.select %246, %242, %208 : vector<8x128xi1>, vector<8x128xf32>
    %c6_i32 = arith.constant 6 : i32
    %248 = arith.index_cast %c6_i32 : i32 to index
    %c0_49 = arith.constant 0 : index
    %c0_50 = arith.constant 0 : index
    %249 = vector.load %arg2[%248, %c0_49, %c0_50] : memref<8x8x128xf32, #tpu.memory_space<vmem>>, vector<1x8x128xf32>
    %250 = vector.shape_cast %249 : vector<1x8x128xf32> to vector<8x128xf32>
    %251 = arith.index_cast %c6_i32 : i32 to index
    %c0_51 = arith.constant 0 : index
    %c0_52 = arith.constant 0 : index
    %252 = vector.load %arg3[%251, %c0_51, %c0_52] : memref<8x1x128xf32, #tpu.memory_space<vmem>>, vector<1x1x128xf32>
    %253 = vector.shape_cast %252 : vector<1x1x128xf32> to vector<1x128xf32>
    %cst_53 = arith.constant dense<0xFF800000> : vector<128xf32>
    %254 = vector.multi_reduction <maximumf>, %247, %cst_53 [0] : vector<8x128xf32> to vector<128xf32>
    %255 = vector.shape_cast %254 : vector<128xf32> to vector<1x128xf32>
    %256 = vector.broadcast %255 : vector<1x128xf32> to vector<8x128xf32>
    %257 = arith.subf %247, %256 : vector<8x128xf32>
    %258 = math.exp %257 : vector<8x128xf32>
    %259 = vector.extract_strided_slice %258 {offsets = [0, 0], sizes = [1, 128], strides = [1, 1]} : vector<8x128xf32> to vector<1x128xf32>
    %260 = vector.broadcast %259 : vector<1x128xf32> to vector<8x128xf32>
    %261 = arith.mulf %260, %4 : vector<8x128xf32>
    %262 = vector.extract_strided_slice %258 {offsets = [1, 0], sizes = [1, 128], strides = [1, 1]} : vector<8x128xf32> to vector<1x128xf32>
    %263 = vector.broadcast %262 : vector<1x128xf32> to vector<8x128xf32>
    %264 = arith.mulf %263, %6 : vector<8x128xf32>
    %265 = arith.addf %261, %264 : vector<8x128xf32>
    %266 = vector.extract_strided_slice %258 {offsets = [2, 0], sizes = [1, 128], strides = [1, 1]} : vector<8x128xf32> to vector<1x128xf32>
    %267 = vector.broadcast %266 : vector<1x128xf32> to vector<8x128xf32>
    %268 = arith.mulf %267, %8 : vector<8x128xf32>
    %269 = arith.addf %265, %268 : vector<8x128xf32>
    %270 = vector.extract_strided_slice %258 {offsets = [3, 0], sizes = [1, 128], strides = [1, 1]} : vector<8x128xf32> to vector<1x128xf32>
    %271 = vector.broadcast %270 : vector<1x128xf32> to vector<8x128xf32>
    %272 = arith.mulf %271, %10 : vector<8x128xf32>
    %273 = arith.addf %269, %272 : vector<8x128xf32>
    %274 = vector.extract_strided_slice %258 {offsets = [4, 0], sizes = [1, 128], strides = [1, 1]} : vector<8x128xf32> to vector<1x128xf32>
    %275 = vector.broadcast %274 : vector<1x128xf32> to vector<8x128xf32>
    %276 = arith.mulf %275, %12 : vector<8x128xf32>
    %277 = arith.addf %273, %276 : vector<8x128xf32>
    %278 = vector.broadcast %255 : vector<1x128xf32> to vector<8x128xf32>
    %279 = arith.addf %250, %278 : vector<8x128xf32>
    %280 = math.log %277 : vector<8x128xf32>
    %281 = arith.addf %279, %280 : vector<8x128xf32>
    %cst_54 = arith.constant 5.000000e-01 : f32
    %282 = vector.broadcast %cst_54 : f32 to vector<1x128xf32>
    %283 = arith.cmpf ogt, %253, %282 : vector<1x128xf32>
    %284 = vector.shape_cast %283 : vector<1x128xi1> to vector<1x128xi1>
    %285 = vector.broadcast %284 : vector<1x128xi1> to vector<8x128xi1>
    %286 = arith.select %285, %281, %247 : vector<8x128xi1>, vector<8x128xf32>
    %c7_i32 = arith.constant 7 : i32
    %287 = arith.index_cast %c7_i32 : i32 to index
    %c0_55 = arith.constant 0 : index
    %c0_56 = arith.constant 0 : index
    %288 = vector.load %arg2[%287, %c0_55, %c0_56] : memref<8x8x128xf32, #tpu.memory_space<vmem>>, vector<1x8x128xf32>
    %289 = vector.shape_cast %288 : vector<1x8x128xf32> to vector<8x128xf32>
    %290 = arith.index_cast %c7_i32 : i32 to index
    %c0_57 = arith.constant 0 : index
    %c0_58 = arith.constant 0 : index
    %291 = vector.load %arg3[%290, %c0_57, %c0_58] : memref<8x1x128xf32, #tpu.memory_space<vmem>>, vector<1x1x128xf32>
    %292 = vector.shape_cast %291 : vector<1x1x128xf32> to vector<1x128xf32>
    %cst_59 = arith.constant dense<0xFF800000> : vector<128xf32>
    %293 = vector.multi_reduction <maximumf>, %286, %cst_59 [0] : vector<8x128xf32> to vector<128xf32>
    %294 = vector.shape_cast %293 : vector<128xf32> to vector<1x128xf32>
    %295 = vector.broadcast %294 : vector<1x128xf32> to vector<8x128xf32>
    %296 = arith.subf %286, %295 : vector<8x128xf32>
    %297 = math.exp %296 : vector<8x128xf32>
    %298 = vector.extract_strided_slice %297 {offsets = [0, 0], sizes = [1, 128], strides = [1, 1]} : vector<8x128xf32> to vector<1x128xf32>
    %299 = vector.broadcast %298 : vector<1x128xf32> to vector<8x128xf32>
    %300 = arith.mulf %299, %4 : vector<8x128xf32>
    %301 = vector.extract_strided_slice %297 {offsets = [1, 0], sizes = [1, 128], strides = [1, 1]} : vector<8x128xf32> to vector<1x128xf32>
    %302 = vector.broadcast %301 : vector<1x128xf32> to vector<8x128xf32>
    %303 = arith.mulf %302, %6 : vector<8x128xf32>
    %304 = arith.addf %300, %303 : vector<8x128xf32>
    %305 = vector.extract_strided_slice %297 {offsets = [2, 0], sizes = [1, 128], strides = [1, 1]} : vector<8x128xf32> to vector<1x128xf32>
    %306 = vector.broadcast %305 : vector<1x128xf32> to vector<8x128xf32>
    %307 = arith.mulf %306, %8 : vector<8x128xf32>
    %308 = arith.addf %304, %307 : vector<8x128xf32>
    %309 = vector.extract_strided_slice %297 {offsets = [3, 0], sizes = [1, 128], strides = [1, 1]} : vector<8x128xf32> to vector<1x128xf32>
    %310 = vector.broadcast %309 : vector<1x128xf32> to vector<8x128xf32>
    %311 = arith.mulf %310, %10 : vector<8x128xf32>
    %312 = arith.addf %308, %311 : vector<8x128xf32>
    %313 = vector.extract_strided_slice %297 {offsets = [4, 0], sizes = [1, 128], strides = [1, 1]} : vector<8x128xf32> to vector<1x128xf32>
    %314 = vector.broadcast %313 : vector<1x128xf32> to vector<8x128xf32>
    %315 = arith.mulf %314, %12 : vector<8x128xf32>
    %316 = arith.addf %312, %315 : vector<8x128xf32>
    %317 = vector.broadcast %294 : vector<1x128xf32> to vector<8x128xf32>
    %318 = arith.addf %289, %317 : vector<8x128xf32>
    %319 = math.log %316 : vector<8x128xf32>
    %320 = arith.addf %318, %319 : vector<8x128xf32>
    %cst_60 = arith.constant 5.000000e-01 : f32
    %321 = vector.broadcast %cst_60 : f32 to vector<1x128xf32>
    %322 = arith.cmpf ogt, %292, %321 : vector<1x128xf32>
    %323 = vector.shape_cast %322 : vector<1x128xi1> to vector<1x128xi1>
    %324 = vector.broadcast %323 : vector<1x128xi1> to vector<8x128xi1>
    %325 = arith.select %324, %320, %286 : vector<8x128xi1>, vector<8x128xf32>
    %c8_i32 = arith.constant 8 : i32
    %c0_61 = arith.constant 0 : index
    %c0_62 = arith.constant 0 : index
    %326 = vector.load %arg8[%c0_61, %c0_62] : memref<8x128xf32, #tpu.memory_space<vmem>>, vector<8x128xf32>
    tpu.vector_store %arg8[%c0_61, %c0_62], %325 {strides = array<i32>} : memref<8x128xf32, #tpu.memory_space<vmem>>, vector<8x128xf32>,
    %c0_i32_63 = arith.constant 0 : i32
    %327 = arith.cmpi eq, %arg1, %c0_i32_63 : i32
    %328 = arith.extui %327 : i1 to i32
    %c0_i32_64 = arith.constant 0 : i32
    %329 = arith.cmpi ne, %328, %c0_i32_64 : i32
    scf.if %329 {
      %c0_65 = arith.constant 0 : index
      %c0_66 = arith.constant 0 : index
      %330 = vector.load %arg6[%c0_65, %c0_66] : memref<8x1xf32, #tpu.memory_space<vmem>>, vector<8x1xf32>
      %331 = vector.broadcast %330 : vector<8x1xf32> to vector<8x128xf32>
      %332 = arith.addf %325, %331 : vector<8x128xf32>
      %cst_67 = arith.constant dense<0xFF800000> : vector<128xf32>
      %333 = vector.multi_reduction <maximumf>, %332, %cst_67 [0] : vector<8x128xf32> to vector<128xf32>
      %334 = vector.shape_cast %333 : vector<128xf32> to vector<1x128xf32>
      %335 = vector.broadcast %334 : vector<1x128xf32> to vector<8x128xf32>
      %336 = arith.subf %332, %335 : vector<8x128xf32>
      %337 = math.exp %336 : vector<8x128xf32>
      %cst_68 = arith.constant dense<0.000000e+00> : vector<128xf32>
      %338 = vector.multi_reduction <add>, %337, %cst_68 [0] : vector<8x128xf32> to vector<128xf32>
      %339 = vector.shape_cast %338 : vector<128xf32> to vector<1x128xf32>
      %340 = math.log %339 : vector<1x128xf32>
      %341 = arith.addf %334, %340 : vector<1x128xf32>
      %c0_69 = arith.constant 0 : index
      %c0_70 = arith.constant 0 : index
      %342 = vector.load %arg7[%c0_69, %c0_70] : memref<1x128xf32, #tpu.memory_space<vmem>>, vector<1x128xf32>
      tpu.vector_store %arg7[%c0_69, %c0_70], %341 {strides = array<i32>} : memref<1x128xf32, #tpu.memory_space<vmem>>, vector<1x128xf32>,
    } else {
    }
    return
  }
  func.func @transform_0(%arg0: i32, %arg1: i32) -> (i32, i32, i32) {
    %c0_i32 = arith.constant 0 : i32
    %c0_i32_0 = arith.constant 0 : i32
    return %arg1, %c0_i32, %arg0 : i32, i32, i32
  }
  func.func @transform_1(%arg0: i32, %arg1: i32) -> (i32, i32, i32) {
    %c0_i32 = arith.constant 0 : i32
    %c0_i32_0 = arith.constant 0 : i32
    return %arg1, %c0_i32, %arg0 : i32, i32, i32
  }
  func.func @transform_2(%arg0: i32, %arg1: i32) -> (i32, i32) {
    %c0_i32 = arith.constant 0 : i32
    %c0_i32_0 = arith.constant 0 : i32
    %c0_i32_1 = arith.constant 0 : i32
    return %c0_i32, %c0_i32_0 : i32, i32
  }
  func.func @transform_3(%arg0: i32, %arg1: i32) -> (i32, i32, i32) {
    %c0_i32 = arith.constant 0 : i32
    %c0_i32_0 = arith.constant 0 : i32
    %c0_i32_1 = arith.constant 0 : i32
    %c0_i32_2 = arith.constant 0 : i32
    return %c0_i32, %c0_i32_0, %c0_i32_1 : i32, i32, i32
  }
  func.func @transform_4(%arg0: i32, %arg1: i32) -> (i32, i32) {
    %c0_i32 = arith.constant 0 : i32
    %c0_i32_0 = arith.constant 0 : i32
    %c0_i32_1 = arith.constant 0 : i32
    return %c0_i32, %c0_i32_0 : i32, i32
  }
  func.func @transform_5(%arg0: i32, %arg1: i32) -> (i32, i32) {
    %c0_i32 = arith.constant 0 : i32
    %c0_i32_0 = arith.constant 0 : i32
    return %c0_i32, %arg0 : i32, i32
  }
}

</mosaic_0001>

<llo_original>
// kernel: crf_token_mean_loss.1
$region0: #{crf_token_mean_loss.1}
  #allocation0 [shape = 'u32[]', space=smem, size = 0x4, offset = 0x4, fixed_abs, tag = 'smem constant byte address 0x4 - core index']
  #allocation1 [shape = 'u32[144,128]{1,0:T(1,128)}', space=vmem, size = 0x12000, scoped, tag = 'internal scratch']
  #allocation2 [shape = 'f32[8,128]{1,0:T(8,128)}', space=vmem, size = 0x1000, scoped, tag = 'scratch operand']
  %s0 = inlined_call_operand.vmem [shape: f32[8,8,128], index: 0, kind: input, shape index: {}]
  %s1 = inlined_call_operand.vmem [shape: f32[8,1,128], index: 1, kind: input, shape index: {}]
  %s2 = inlined_call_operand.vmem [shape: f32[8,1], index: 2, kind: input, shape index: {}]
  %s3 = inlined_call_operand.vmem [shape: f32[5,8,128], index: 3, kind: input, shape index: {}]
  %s4 = inlined_call_operand.vmem [shape: f32[8,1], index: 4, kind: input, shape index: {}]
  %s5 = inlined_call_operand.vmem [shape: f32[1,128], index: 5, kind: output, shape index: {}]
  %s6 = sld [smem:[#allocation0]]
  $region38: #{crf_token_mean_loss.1} parent=0
    _
  %s8 = ssub.s32 1, %s6
  %s9 = scalar_select 0, %s8, %s6
  // Predicated region
  $region2: #{crf_token_mean_loss.1} parent=0 // pred_check
    _
  $region3: #{crf_token_mean_loss.1} parent=0 // pred_check_branch
    %11 = sbr.rel (0) target = $region5
  $region4: #{crf_token_mean_loss.1} parent=0 // pred_region
    _
  $region5: #{crf_token_mean_loss.1} parent=0 // pred_fallthru
    _
  // Predicated region
  $region6: #{crf_token_mean_loss.1} parent=0 // pred_check
    _
  $region7: #{crf_token_mean_loss.1} parent=0 // pred_check_branch
    %13 = sbr.rel (0) target = $region9
  $region8: #{crf_token_mean_loss.1} parent=0 // pred_region
    _
  $region9: #{crf_token_mean_loss.1} parent=0 // pred_fallthru
    _
  // Predicated region
  $region10: #{crf_token_mean_loss.1} parent=0 // pred_check
    _
  $region11: #{crf_token_mean_loss.1} parent=0 // pred_check_branch
    %15 = sbr.rel (0) target = $region13
  $region12: #{crf_token_mean_loss.1} parent=0 // pred_region
    _
  $region13: #{crf_token_mean_loss.1} parent=0 // pred_fallthru
    _
  // Predicated region
  $region14: #{crf_token_mean_loss.1} parent=0 // pred_check
    _
  $region15: #{crf_token_mean_loss.1} parent=0 // pred_check_branch
    %17 = sbr.rel (0) target = $region17
  $region16: #{crf_token_mean_loss.1} parent=0 // pred_region
    _
  $region17: #{crf_token_mean_loss.1} parent=0 // pred_fallthru
    _
  // Predicated region
  $region18: #{crf_token_mean_loss.1} parent=0 // pred_check
    _
  $region19: #{crf_token_mean_loss.1} parent=0 // pred_check_branch
    %19 = sbr.rel (0) target = $region21
  $region20: #{crf_token_mean_loss.1} parent=0 // pred_region
    _
  $region21: #{crf_token_mean_loss.1} parent=0 // pred_fallthru
    _
  %p20 = scmp.eq.s32.totalorder 0, 0
  // Predicated region
  $region22: #{crf_token_mean_loss.1} parent=0 // pred_check
    %p21 = pneg %p20
  $region23: #{crf_token_mean_loss.1} parent=0 // pred_check_branch
    %23 = sbr.rel (%p21) target = $region25
  $region24: #{crf_token_mean_loss.1} parent=0 // pred_region
    %v24 = vld [vmem:[%s2] sm:$0xff]
    %v25 = vld [vmem:[%s0] sm:$0xff]
    %27 = vset.pattern.permute.xlu0 0
    %28 = vperm.xlu0 %27, %v24
    %v29 = vpop.permute.xlu0 %28
    %v31 = vadd.f32 %v29, %v25
    %32 = vst [vmem:[#allocation2] sm:$0xff] %v31
  $region25: #{crf_token_mean_loss.1} parent=0 // pred_fallthru
    _
  %v33 = vld [vmem:[%s3] sm:$0xff]
  %s34 = scalar_lea.vmem %s3, 8
  %v35 = vld [vmem:[%s34] sm:$0xff]
  %s36 = scalar_lea.vmem %s3, 16
  %v37 = vld [vmem:[%s36] sm:$0xff]
  %s38 = scalar_lea.vmem %s3, 24
  %v39 = vld [vmem:[%s38] sm:$0xff]
  %s40 = scalar_lea.vmem %s3, 32
  %v41 = vld [vmem:[%s40] sm:$0xff]
  %v42 = vld [vmem:[#allocation2] sm:$0xff]
  %v43 = vld [vmem:[%s0] sm:$0xff]
  %v44 = vld [vmem:[%s1] sm:$0x1]
  %v45 = vrot.slane %v42, 4
  %v46 = vmax.f32 %v42, %v45
  %v47 = vrot.slane %v46, 2
  %v48 = vmax.f32 %v46, %v47
  %v49 = vrot.slane %v48, 1
  %v50 = vmax.f32 %v48, %v49
  %v51 = vsub.f32 %v42, %v50
  %v52 = vmul.f32 %v51, 1.442695
  %v53 = vpow.pop %v52
  %v54 = vlaneseq
  %v55 = vshrl.u32 %v54, 7
  %v56 = vsub.s32 0, %v55
  %v57 = vrot.slane %v53, %v56
  %v58 = vmul.f32 %v57, %v33
  %v59 = vlaneseq
  %v60 = vshrl.u32 %v59, 7
  %v61 = vsub.s32 1, %v60
  %v62 = vrot.slane %v53, %v61
  %v63 = vmul.f32 %v62, %v35
  %v64 = vadd.f32 %v58, %v63
  %v65 = vlaneseq
  %v66 = vshrl.u32 %v65, 7
  %v67 = vsub.s32 2, %v66
  %v68 = vrot.slane %v53, %v67
  %v69 = vmul.f32 %v68, %v37
  %v70 = vadd.f32 %v64, %v69
  %v71 = vlaneseq
  %v72 = vshrl.u32 %v71, 7
  %v73 = vsub.s32 3, %v72
  %v74 = vrot.slane %v53, %v73
  %v75 = vmul.f32 %v74, %v39
  %v76 = vadd.f32 %v70, %v75
  %v77 = vlaneseq
  %v78 = vshrl.u32 %v77, 7
  %v79 = vsub.s32 4, %v78
  %v80 = vrot.slane %v53, %v79
  %v81 = vmul.f32 %v80, %v41
  %v82 = vadd.f32 %v76, %v81
  %v83 = vadd.f32 %v43, %v50
  %v84 = vlog2.pop %v82
  %v85 = vmul.f32 %v84, 0.6931472
  %v86 = vadd.f32 %v83, %v85
  %vm87 = vcmp.gt.f32.partialorder %v44, 0.5
  %v88 = vsel %vm87, 1, 0
  %v89 = vlaneseq
  %v90 = vshrl.u32 %v89, 7
  %v91 = vsub.s32 0, %v90
  %v92 = vrot.slane %v88, %v91
  %vm93 = vcmp.eq.s32.totalorder %v92, 1
  %v94 = vsel %vm93, %v86, %v42
  %s95 = scalar_lea.vmem %s0, 8
  %v96 = vld [vmem:[%s95] sm:$0xff]
  %s97 = scalar_lea.vmem %s1, 1
  %v98 = vld [vmem:[%s97] sm:$0x1]
  %v99 = vrot.slane %v94, 4
  %v100 = vmax.f32 %v94, %v99
  %v101 = vrot.slane %v100, 2
  %v102 = vmax.f32 %v100, %v101
  %v103 = vrot.slane %v102, 1
  %v104 = vmax.f32 %v102, %v103
  %v105 = vsub.f32 %v94, %v104
  %v106 = vmul.f32 %v105, 1.442695
  %v107 = vpow.pop %v106
  %v108 = vlaneseq
  %v109 = vshrl.u32 %v108, 7
  %v110 = vsub.s32 0, %v109
  %v111 = vrot.slane %v107, %v110
  %v112 = vmul.f32 %v111, %v33
  %v113 = vlaneseq
  %v114 = vshrl.u32 %v113, 7
  %v115 = vsub.s32 1, %v114
  %v116 = vrot.slane %v107, %v115
  %v117 = vmul.f32 %v116, %v35
  %v118 = vadd.f32 %v112, %v117
  %v119 = vlaneseq
  %v120 = vshrl.u32 %v119, 7
  %v121 = vsub.s32 2, %v120
  %v122 = vrot.slane %v107, %v121
  %v123 = vmul.f32 %v122, %v37
  %v124 = vadd.f32 %v118, %v123
  %v125 = vlaneseq
  %v126 = vshrl.u32 %v125, 7
  %v127 = vsub.s32 3, %v126
  %v128 = vrot.slane %v107, %v127
  %v129 = vmul.f32 %v128, %v39
  %v130 = vadd.f32 %v124, %v129
  %v131 = vlaneseq
  %v132 = vshrl.u32 %v131, 7
  %v133 = vsub.s32 4, %v132
  %v134 = vrot.slane %v107, %v133
  %v135 = vmul.f32 %v134, %v41
  %v136 = vadd.f32 %v130, %v135
  %v137 = vadd.f32 %v96, %v104
  %v138 = vlog2.pop %v136
  %v139 = vmul.f32 %v138, 0.6931472
  %v140 = vadd.f32 %v137, %v139
  %vm141 = vcmp.gt.f32.partialorder %v98, 0.5
  %v142 = vsel %vm141, 1, 0
  %v143 = vlaneseq
  %v144 = vshrl.u32 %v143, 7
  %v145 = vsub.s32 0, %v144
  %v146 = vrot.slane %v142, %v145
  %vm147 = vcmp.eq.s32.totalorder %v146, 1
  %v148 = vsel %vm147, %v140, %v94
  %s149 = scalar_lea.vmem %s0, 16
  %v150 = vld [vmem:[%s149] sm:$0xff]
  %s151 = scalar_lea.vmem %s1, 2
  %v152 = vld [vmem:[%s151] sm:$0x1]
  %v153 = vrot.slane %v148, 4
  %v154 = vmax.f32 %v148, %v153
  %v155 = vrot.slane %v154, 2
  %v156 = vmax.f32 %v154, %v155
  %v157 = vrot.slane %v156, 1
  %v158 = vmax.f32 %v156, %v157
  %v159 = vsub.f32 %v148, %v158
  %v160 = vmul.f32 %v159, 1.442695
  %v161 = vpow.pop %v160
  %v162 = vlaneseq
  %v163 = vshrl.u32 %v162, 7
  %v164 = vsub.s32 0, %v163
  %v165 = vrot.slane %v161, %v164
  %v166 = vmul.f32 %v165, %v33
  %v167 = vlaneseq
  %v168 = vshrl.u32 %v167, 7
  %v169 = vsub.s32 1, %v168
  %v170 = vrot.slane %v161, %v169
  %v171 = vmul.f32 %v170, %v35
  %v172 = vadd.f32 %v166, %v171
  %v173 = vlaneseq
  %v174 = vshrl.u32 %v173, 7
  %v175 = vsub.s32 2, %v174
  %v176 = vrot.slane %v161, %v175
  %v177 = vmul.f32 %v176, %v37
  %v178 = vadd.f32 %v172, %v177
  %v179 = vlaneseq
  %v180 = vshrl.u32 %v179, 7
  %v181 = vsub.s32 3, %v180
  %v182 = vrot.slane %v161, %v181
  %v183 = vmul.f32 %v182, %v39
  %v184 = vadd.f32 %v178, %v183
  %v185 = vlaneseq
  %v186 = vshrl.u32 %v185, 7
  %v187 = vsub.s32 4, %v186
  %v188 = vrot.slane %v161, %v187
  %v189 = vmul.f32 %v188, %v41
  %v190 = vadd.f32 %v184, %v189
  %v191 = vadd.f32 %v150, %v158
  %v192 = vlog2.pop %v190
  %v193 = vmul.f32 %v192, 0.6931472
  %v194 = vadd.f32 %v191, %v193
  %vm195 = vcmp.gt.f32.partialorder %v152, 0.5
  %v196 = vsel %vm195, 1, 0
  %v197 = vlaneseq
  %v198 = vshrl.u32 %v197, 7
  %v199 = vsub.s32 0, %v198
  %v200 = vrot.slane %v196, %v199
  %vm201 = vcmp.eq.s32.totalorder %v200, 1
  %v202 = vsel %vm201, %v194, %v148
  %s203 = scalar_lea.vmem %s0, 24
  %v204 = vld [vmem:[%s203] sm:$0xff]
  %s205 = scalar_lea.vmem %s1, 3
  %v206 = vld [vmem:[%s205] sm:$0x1]
  %v207 = vrot.slane %v202, 4
  %v208 = vmax.f32 %v202, %v207
  %v209 = vrot.slane %v208, 2
  %v210 = vmax.f32 %v208, %v209
  %v211 = vrot.slane %v210, 1
  %v212 = vmax.f32 %v210, %v211
  %v213 = vsub.f32 %v202, %v212
  %v214 = vmul.f32 %v213, 1.442695
  %v215 = vpow.pop %v214
  %v216 = vlaneseq
  %v217 = vshrl.u32 %v216, 7
  %v218 = vsub.s32 0, %v217
  %v219 = vrot.slane %v215, %v218
  %v220 = vmul.f32 %v219, %v33
  %v221 = vlaneseq
  %v222 = vshrl.u32 %v221, 7
  %v223 = vsub.s32 1, %v222
  %v224 = vrot.slane %v215, %v223
  %v225 = vmul.f32 %v224, %v35
  %v226 = vadd.f32 %v220, %v225
  %v227 = vlaneseq
  %v228 = vshrl.u32 %v227, 7
  %v229 = vsub.s32 2, %v228
  %v230 = vrot.slane %v215, %v229
  %v231 = vmul.f32 %v230, %v37
  %v232 = vadd.f32 %v226, %v231
  %v233 = vlaneseq
  %v234 = vshrl.u32 %v233, 7
  %v235 = vsub.s32 3, %v234
  %v236 = vrot.slane %v215, %v235
  %v237 = vmul.f32 %v236, %v39
  %v238 = vadd.f32 %v232, %v237
  %v239 = vlaneseq
  %v240 = vshrl.u32 %v239, 7
  %v241 = vsub.s32 4, %v240
  %v242 = vrot.slane %v215, %v241
  %v243 = vmul.f32 %v242, %v41
  %v244 = vadd.f32 %v238, %v243
  %v245 = vadd.f32 %v204, %v212
  %v246 = vlog2.pop %v244
  %v247 = vmul.f32 %v246, 0.6931472
  %v248 = vadd.f32 %v245, %v247
  %vm249 = vcmp.gt.f32.partialorder %v206, 0.5
  %v250 = vsel %vm249, 1, 0
  %v251 = vlaneseq
  %v252 = vshrl.u32 %v251, 7
  %v253 = vsub.s32 0, %v252
  %v254 = vrot.slane %v250, %v253
  %vm255 = vcmp.eq.s32.totalorder %v254, 1
  %v256 = vsel %vm255, %v248, %v202
  %s257 = scalar_lea.vmem %s0, 32
  %v258 = vld [vmem:[%s257] sm:$0xff]
  %s259 = scalar_lea.vmem %s1, 4
  %v260 = vld [vmem:[%s259] sm:$0x1]
  %v261 = vrot.slane %v256, 4
  %v262 = vmax.f32 %v256, %v261
  %v263 = vrot.slane %v262, 2
  %v264 = vmax.f32 %v262, %v263
  %v265 = vrot.slane %v264, 1
  %v266 = vmax.f32 %v264, %v265
  %v267 = vsub.f32 %v256, %v266
  %v268 = vmul.f32 %v267, 1.442695
  %v269 = vpow.pop %v268
  %v270 = vlaneseq
  %v271 = vshrl.u32 %v270, 7
  %v272 = vsub.s32 0, %v271
  %v273 = vrot.slane %v269, %v272
  %v274 = vmul.f32 %v273, %v33
  %v275 = vlaneseq
  %v276 = vshrl.u32 %v275, 7
  %v277 = vsub.s32 1, %v276
  %v278 = vrot.slane %v269, %v277
  %v279 = vmul.f32 %v278, %v35
  %v280 = vadd.f32 %v274, %v279
  %v281 = vlaneseq
  %v282 = vshrl.u32 %v281, 7
  %v283 = vsub.s32 2, %v282
  %v284 = vrot.slane %v269, %v283
  %v285 = vmul.f32 %v284, %v37
  %v286 = vadd.f32 %v280, %v285
  %v287 = vlaneseq
  %v288 = vshrl.u32 %v287, 7
  %v289 = vsub.s32 3, %v288
  %v290 = vrot.slane %v269, %v289
  %v291 = vmul.f32 %v290, %v39
  %v292 = vadd.f32 %v286, %v291
  %v293 = vlaneseq
  %v294 = vshrl.u32 %v293, 7
  %v295 = vsub.s32 4, %v294
  %v296 = vrot.slane %v269, %v295
  %v297 = vmul.f32 %v296, %v41
  %v298 = vadd.f32 %v292, %v297
  %v299 = vadd.f32 %v258, %v266
  %v300 = vlog2.pop %v298
  %v301 = vmul.f32 %v300, 0.6931472
  %v302 = vadd.f32 %v299, %v301
  %vm303 = vcmp.gt.f32.partialorder %v260, 0.5
  %v304 = vsel %vm303, 1, 0
  %v305 = vlaneseq
  %v306 = vshrl.u32 %v305, 7
  %v307 = vsub.s32 0, %v306
  %v308 = vrot.slane %v304, %v307
  %vm309 = vcmp.eq.s32.totalorder %v308, 1
  %v310 = vsel %vm309, %v302, %v256
  %s311 = scalar_lea.vmem %s0, 40
  %v312 = vld [vmem:[%s311] sm:$0xff]
  %s313 = scalar_lea.vmem %s1, 5
  %v314 = vld [vmem:[%s313] sm:$0x1]
  %v315 = vrot.slane %v310, 4
  %v316 = vmax.f32 %v310, %v315
  %v317 = vrot.slane %v316, 2
  %v318 = vmax.f32 %v316, %v317
  %v319 = vrot.slane %v318, 1
  %v320 = vmax.f32 %v318, %v319
  %v321 = vsub.f32 %v310, %v320
  %v322 = vmul.f32 %v321, 1.442695
  %v323 = vpow.pop %v322
  %v324 = vlaneseq
  %v325 = vshrl.u32 %v324, 7
  %v326 = vsub.s32 0, %v325
  %v327 = vrot.slane %v323, %v326
  %v328 = vmul.f32 %v327, %v33
  %v329 = vlaneseq
  %v330 = vshrl.u32 %v329, 7
  %v331 = vsub.s32 1, %v330
  %v332 = vrot.slane %v323, %v331
  %v333 = vmul.f32 %v332, %v35
  %v334 = vadd.f32 %v328, %v333
  %v335 = vlaneseq
  %v336 = vshrl.u32 %v335, 7
  %v337 = vsub.s32 2, %v336
  %v338 = vrot.slane %v323, %v337
  %v339 = vmul.f32 %v338, %v37
  %v340 = vadd.f32 %v334, %v339
  %v341 = vlaneseq
  %v342 = vshrl.u32 %v341, 7
  %v343 = vsub.s32 3, %v342
  %v344 = vrot.slane %v323, %v343
  %v345 = vmul.f32 %v344, %v39
  %v346 = vadd.f32 %v340, %v345
  %v347 = vlaneseq
  %v348 = vshrl.u32 %v347, 7
  %v349 = vsub.s32 4, %v348
  %v350 = vrot.slane %v323, %v349
  %v351 = vmul.f32 %v350, %v41
  %v352 = vadd.f32 %v346, %v351
  %v353 = vadd.f32 %v312, %v320
  %v354 = vlog2.pop %v352
  %v355 = vmul.f32 %v354, 0.6931472
  %v356 = vadd.f32 %v353, %v355
  %vm357 = vcmp.gt.f32.partialorder %v314, 0.5
  %v358 = vsel %vm357, 1, 0
  %v359 = vlaneseq
  %v360 = vshrl.u32 %v359, 7
  %v361 = vsub.s32 0, %v360
  %v362 = vrot.slane %v358, %v361
  %vm363 = vcmp.eq.s32.totalorder %v362, 1
  %v364 = vsel %vm363, %v356, %v310
  %s365 = scalar_lea.vmem %s0, 48
  %v366 = vld [vmem:[%s365] sm:$0xff]
  %s367 = scalar_lea.vmem %s1, 6
  %v368 = vld [vmem:[%s367] sm:$0x1]
  %v369 = vrot.slane %v364, 4
  %v370 = vmax.f32 %v364, %v369
  %v371 = vrot.slane %v370, 2
  %v372 = vmax.f32 %v370, %v371
  %v373 = vrot.slane %v372, 1
  %v374 = vmax.f32 %v372, %v373
  %v375 = vsub.f32 %v364, %v374
  %v376 = vmul.f32 %v375, 1.442695
  %v377 = vpow.pop %v376
  %v378 = vlaneseq
  %v379 = vshrl.u32 %v378, 7
  %v380 = vsub.s32 0, %v379
  %v381 = vrot.slane %v377, %v380
  %v382 = vmul.f32 %v381, %v33
  %v383 = vlaneseq
  %v384 = vshrl.u32 %v383, 7
  %v385 = vsub.s32 1, %v384
  %v386 = vrot.slane %v377, %v385
  %v387 = vmul.f32 %v386, %v35
  %v388 = vadd.f32 %v382, %v387
  %v389 = vlaneseq
  %v390 = vshrl.u32 %v389, 7
  %v391 = vsub.s32 2, %v390
  %v392 = vrot.slane %v377, %v391
  %v393 = vmul.f32 %v392, %v37
  %v394 = vadd.f32 %v388, %v393
  %v395 = vlaneseq
  %v396 = vshrl.u32 %v395, 7
  %v397 = vsub.s32 3, %v396
  %v398 = vrot.slane %v377, %v397
  %v399 = vmul.f32 %v398, %v39
  %v400 = vadd.f32 %v394, %v399
  %v401 = vlaneseq
  %v402 = vshrl.u32 %v401, 7
  %v403 = vsub.s32 4, %v402
  %v404 = vrot.slane %v377, %v403
  %v405 = vmul.f32 %v404, %v41
  %v406 = vadd.f32 %v400, %v405
  %v407 = vadd.f32 %v366, %v374
  %v408 = vlog2.pop %v406
  %v409 = vmul.f32 %v408, 0.6931472
  %v410 = vadd.f32 %v407, %v409
  %vm411 = vcmp.gt.f32.partialorder %v368, 0.5
  %v412 = vsel %vm411, 1, 0
  %v413 = vlaneseq
  %v414 = vshrl.u32 %v413, 7
  %v415 = vsub.s32 0, %v414
  %v416 = vrot.slane %v412, %v415
  %vm417 = vcmp.eq.s32.totalorder %v416, 1
  %v418 = vsel %vm417, %v410, %v364
  %s419 = scalar_lea.vmem %s0, 56
  %v420 = vld [vmem:[%s419] sm:$0xff]
  %s421 = scalar_lea.vmem %s1, 7
  %v422 = vld [vmem:[%s421] sm:$0x1]
  %v423 = vrot.slane %v418, 4
  %v424 = vmax.f32 %v418, %v423
  %v425 = vrot.slane %v424, 2
  %v426 = vmax.f32 %v424, %v425
  %v427 = vrot.slane %v426, 1
  %v428 = vmax.f32 %v426, %v427
  %v429 = vsub.f32 %v418, %v428
  %v430 = vmul.f32 %v429, 1.442695
  %v431 = vpow.pop %v430
  %v432 = vlaneseq
  %v433 = vshrl.u32 %v432, 7
  %v434 = vsub.s32 0, %v433
  %v435 = vrot.slane %v431, %v434
  %v436 = vmul.f32 %v435, %v33
  %v437 = vlaneseq
  %v438 = vshrl.u32 %v437, 7
  %v439 = vsub.s32 1, %v438
  %v440 = vrot.slane %v431, %v439
  %v441 = vmul.f32 %v440, %v35
  %v442 = vadd.f32 %v436, %v441
  %v443 = vlaneseq
  %v444 = vshrl.u32 %v443, 7
  %v445 = vsub.s32 2, %v444
  %v446 = vrot.slane %v431, %v445
  %v447 = vmul.f32 %v446, %v37
  %v448 = vadd.f32 %v442, %v447
  %v449 = vlaneseq
  %v450 = vshrl.u32 %v449, 7
  %v451 = vsub.s32 3, %v450
  %v452 = vrot.slane %v431, %v451
  %v453 = vmul.f32 %v452, %v39
  %v454 = vadd.f32 %v448, %v453
  %v455 = vlaneseq
  %v456 = vshrl.u32 %v455, 7
  %v457 = vsub.s32 4, %v456
  %v458 = vrot.slane %v431, %v457
  %v459 = vmul.f32 %v458, %v41
  %v460 = vadd.f32 %v454, %v459
  %v461 = vadd.f32 %v420, %v428
  %v462 = vlog2.pop %v460
  %v463 = vmul.f32 %v462, 0.6931472
  %v464 = vadd.f32 %v461, %v463
  %vm465 = vcmp.gt.f32.partialorder %v422, 0.5
  %v466 = vsel %vm465, 1, 0
  %v467 = vlaneseq
  %v468 = vshrl.u32 %v467, 7
  %v469 = vsub.s32 0, %v468
  %v470 = vrot.slane %v466, %v469
  %vm471 = vcmp.eq.s32.totalorder %v470, 1
  %v472 = vsel %vm471, %v464, %v418
  %473 = vst [vmem:[#allocation2] sm:$0xff] %v472
  // Predicated region
  $region26: #{crf_token_mean_loss.1} parent=0 // pred_check
    %p474 = pneg %p20
  $region27: #{crf_token_mean_loss.1} parent=0 // pred_check_branch
    %476 = sbr.rel (%p474) target = $region29
  $region28: #{crf_token_mean_loss.1} parent=0 // pred_region
    %v477 = vld [vmem:[%s4] sm:$0xff]
    %479 = vset.pattern.permute.xlu0 0
    %480 = vperm.xlu0 %479, %v477
    %v481 = vpop.permute.xlu0 %480
    %v483 = vadd.f32 %v472, %v481
    %v484 = vrot.slane %v483, 4
    %v485 = vmax.f32 %v483, %v484
    %v486 = vrot.slane %v485, 2
    %v487 = vmax.f32 %v485, %v486
    %v488 = vrot.slane %v487, 1
    %v489 = vmax.f32 %v487, %v488
    %v490 = vsub.f32 %v483, %v489
    %v491 = vmul.f32 %v490, 1.442695
    %v492 = vpow.pop %v491
    %v493 = vrot.slane %v492, 4
    %v494 = vadd.f32 %v492, %v493
    %v495 = vrot.slane %v494, 2
    %v496 = vadd.f32 %v494, %v495
    %v497 = vrot.slane %v496, 1
    %v498 = vadd.f32 %v496, %v497
    %v499 = vlog2.pop %v498
    %v500 = vmul.f32 %v499, 0.6931472
    %v501 = vadd.f32 %v489, %v500
    %502 = vst [vmem:[%s5] sm:$0x1] %v501
  $region29: #{crf_token_mean_loss.1} parent=0 // pred_fallthru
    _
  // Predicated region
  $region30: #{crf_token_mean_loss.1} parent=0 // pred_check
    _
  $region31: #{crf_token_mean_loss.1} parent=0 // pred_check_branch
    %504 = sbr.rel (0) target = $region33
  $region32: #{crf_token_mean_loss.1} parent=0 // pred_region
    _
  $region33: #{crf_token_mean_loss.1} parent=0 // pred_fallthru
    _
  // Predicated region
  $region34: #{crf_token_mean_loss.1} parent=0 // pred_check
    _
  $region35: #{crf_token_mean_loss.1} parent=0 // pred_check_branch
    %506 = sbr.rel (0) target = $region37
  $region36: #{crf_token_mean_loss.1} parent=0 // pred_region
    _
  $region37: #{crf_token_mean_loss.1} parent=0 // pred_fallthru
    _

</llo_original>
